<compile_context>
chip_gen: v6e
topology: v6e:2x2x1
jax: 0.10.0
libtpu: 0.0.40
codegen_flags: <defaults>
</compile_context>

<pallas_src>
import numpy as np
import jax
import jax.numpy as jnp
from jax.experimental import pallas as pl
from jax.experimental.pallas import tpu as pltpu

# ----------------------------- small synthetic configuration -----------------------------
B          = 2            # flattened batch*sequence rows
C          = 3            # image channels
H_IN, W_IN = 16, 16       # raw camera image size
INPUT_IMAGE_SIZE = (8, 8) # F.interpolate target size
ROUTE_DIM  = 16
ACTION_DIM = 6
HIST_DIM   = 32           # RSSM deterministic state ("history")
SAMP_DIM   = 16           # RSSM stochastic state ("sample")
OBS_DIM    = 32           # fused observation embedding
ROUTE_FEAT = 16
POLY_STATE = 32           # action_policy.poly_state_dim
GEN_HID    = 64
GEN_ACT    = 6            # generalist action dim
F32  = jnp.float32
BF16 = jnp.bfloat16

IMG_FEAT = C * H_IN * W_IN                     # 768 (flattened NCHW image row)

# ---- packed activation slab column layout: x_all is [B, X_W] bf16 ----
SPD_COL  = IMG_FEAT                            # 768  speed
HIST_COL = SPD_COL + 1                         # 769  history_input [32]
SAMP_COL = HIST_COL + HIST_DIM                 # 801  sample_input  [16]
ACT_COL  = SAMP_COL + SAMP_DIM                 # 817  action_input  [6]
RTE_COL  = ACT_COL + ACTION_DIM                # 823  route         [16]
GOAL_COL = RTE_COL + ROUTE_DIM                 # 839  goal heading
X_W      = 896                                 # 7 full 128-lane tiles

# block-diagonal history+route fused matmul: LHS = x_all[:, HR_COL:HR_COL+HR_K]
HR_COL = HIST_COL                              # hist|samp|action|route|goal|pad
HR_K   = 80                                    # 70 real rows, rows 70:80 of the weight are zero
HR_N   = HIST_DIM + ROUTE_FEAT                 # 48 (history cols 0:32, route cols 32:48)

# ---- packed weight slab row layout: w_all is [W_ROWS, SLAB_W] bf16, 16-row-aligned blocks ----
SLAB_W   = 64
W_HR_OFF = 0                                   # block-diag (w_hh|w_hs|w_ha ; w_r)  [80, 48]
W_Z_OFF  = 80                                  # fused (w_zh|w_zo)                  [64, 16]
W_F_OFF  = 144                                 # fused (w_fh|w_fs|w_fr)             [64, 32]
W_G1_OFF = 208                                 # w_g1s                              [32, 64]
W_G2_OFF = 240                                 # w_g2                               [64, 6]
ROW_BASE = 304                                 # bias / broadcast rows appended at the tail
(R_BOBS, R_BHR, R_BZ, R_BF, R_BG1, R_BG2, R_WSPD, R_WG1C, R_WG1N) = range(9)
W_ROWS   = 320

OUT_W = 128                                    # full lane-dense output vreg:
                                               # [gen_action(6) | history(32) | sample(16) | pad]


# ----------------------------------- Pallas kernel ---------------------------------------
def _policy_kernel(x_ref, w_img_ref, w_all_ref, out_ref):
    def mm(a, w):
        # bf16 x bf16 operands on the MXU, f32 accumulation.
        return jnp.dot(a.astype(BF16), w, preferred_element_type=jnp.float32)

    def row(r, n):
        return w_all_ref[ROW_BASE + r:ROW_BASE + r + 1, 0:n]

    speed = x_ref[:, SPD_COL:SPD_COL + 1].astype(jnp.float32)        # [B, 1]
    goal  = x_ref[:, GOAL_COL:GOAL_COL + 1].astype(jnp.float32)      # [B, 1]

    # ---- stage 1a: image observation encoder (bilinear resize folded into the weight) ----
    obs = jnp.maximum(
        mm(x_ref[:, 0:IMG_FEAT], w_img_ref[...])
        + speed * row(R_WSPD, OBS_DIM)
        + row(R_BOBS, OBS_DIM), 0.0)                                 # [B, OBS_DIM]

    # ---- stage 1b: ONE block-diagonal matmul = history update + route encoder ----
    hr = (mm(x_ref[:, HR_COL:HR_COL + HR_K],
             w_all_ref[W_HR_OFF:W_HR_OFF + HR_K, 0:HR_N])
          + row(R_BHR, HR_N))                                        # [B, 48]
    history    = jnp.tanh(hr[:, 0:HIST_DIM])                         # [B, HIST_DIM]
    route_feat = jnp.maximum(hr[:, HIST_DIM:HR_N], 0.0)              # [B, ROUTE_FEAT]

    # ---- stage 2: posterior "sample" on [history | obs] (fused w_zh|w_zo) ----
    # v7x note: MRB would prefer two accumulating matmuls over this lane concat.
    sample = jnp.tanh(
        mm(jnp.concatenate([history, obs], axis=-1),
           w_all_ref[W_Z_OFF:W_Z_OFF + HIST_DIM + OBS_DIM, 0:SAMP_DIM])
        + row(R_BZ, SAMP_DIM))                                       # [B, SAMP_DIM]

    # ---- stage 3: policy_state_fusion on [history | sample | route_feat] ----
    base_state = jnp.maximum(
        mm(jnp.concatenate([history, sample, route_feat], axis=-1),
           w_all_ref[W_F_OFF:W_F_OFF + HIST_DIM + SAMP_DIM + ROUTE_FEAT, 0:POLY_STATE])
        + row(R_BF, POLY_STATE), 0.0)                                # [B, POLY_STATE]

    # ---- stage 4: compose_policy_state (cos/sin goal rows) + generalist MLP ----
    hidden = jnp.maximum(
        mm(base_state, w_all_ref[W_G1_OFF:W_G1_OFF + POLY_STATE, 0:GEN_HID])
        + jnp.cos(goal) * row(R_WG1C, GEN_HID)
        + jnp.sin(goal) * row(R_WG1N, GEN_HID)
        + row(R_BG1, GEN_HID), 0.0)                                  # [B, GEN_HID]

    gen_action = jnp.tanh(
        mm(hidden, w_all_ref[W_G2_OFF:W_G2_OFF + GEN_HID, 0:GEN_ACT])
        + row(R_BG2, GEN_ACT))                                       # [B, GEN_ACT]

    # ---- single full-width (128 lane) unmasked output store ----
    pad = jnp.zeros((gen_action.shape[0], OUT_W - GEN_ACT - HIST_DIM - SAMP_DIM), jnp.float32)
    out_ref[...] = jnp.concatenate([gen_action, history, sample, pad], axis=-1)


def _pallas_forward(x_all, packed):
    vmem = pl.BlockSpec(memory_space=pltpu.MemorySpace.VMEM)
    flops = 2 * B * (IMG_FEAT * OBS_DIM
                     + HR_K * HR_N
                     + (HIST_DIM + OBS_DIM) * SAMP_DIM
                     + (HIST_DIM + SAMP_DIM + ROUTE_FEAT) * POLY_STATE
                     + POLY_STATE * GEN_HID
                     + GEN_HID * GEN_ACT)
    bytes_accessed = 2 * (x_all.size + packed["w_img"].size + packed["w_all"].size) + 4 * B * OUT_W
    cost = pl.CostEstimate(flops=int(flops),
                           transcendentals=int(B * (HIST_DIM + SAMP_DIM + GEN_ACT + 2)),
                           bytes_accessed=int(bytes_accessed))
    return pl.pallas_call(
        _policy_kernel,
        out_shape=jax.ShapeDtypeStruct((B, OUT_W), F32),
        in_specs=[vmem, vmem, vmem],
        out_specs=vmem,
        cost_estimate=cost,
    )(x_all, packed["w_img"], packed["w_all"])


# --------------------------------- glue / wrapper -----------------------------------------
def generalist_policy_inference(packed_params, image, route, speed, action_input,
                                history_input, sample_input, goal_heading):
    """forward(image, route, speed, action_input, history_input, sample_input, goal_heading)
       -> (generalist_action, history, sample)"""
    # image.squeeze(0): [1, B, C, H, W] -> [B, C, H, W]; flatten NCHW row-major
    img = jnp.squeeze(image, axis=0).reshape(B, IMG_FEAT)
    # pack_sequence_dim(route): [B, S, D] -> [B*S, D]   (S == 1 here)
    route_packed = route.reshape(-1, ROUTE_DIM)
    pad = jnp.zeros((B, X_W - (GOAL_COL + 1)), F32)
    # single lane-dense bf16 activation slab (matches the column layout above)
    x_all = jnp.concatenate([img, speed, history_input, sample_input, action_input,
                             route_packed, goal_heading, pad], axis=-1).astype(BF16)
    out = _pallas_forward(x_all, packed_params)
    gen_action = out[:, 0:GEN_ACT]
    history    = out[:, GEN_ACT:GEN_ACT + HIST_DIM]
    sample     = out[:, GEN_ACT + HIST_DIM:GEN_ACT + HIST_DIM + SAMP_DIM]
    return gen_action, history, sample


# ------------------------------ deterministic parameters ----------------------------------
def _linear_interp_matrix(in_size, out_size):
    # 1-D weights of torch F.interpolate(mode='bilinear', align_corners=False)
    scale = in_size / out_size
    s = (np.arange(out_size) + 0.5) * scale - 0.5
    s = np.clip(s, 0.0, in_size - 1)
    x0 = np.floor(s).astype(np.int64)
    x1 = np.minimum(x0 + 1, in_size - 1)
    w1 = (s - x0).astype(np.float32)
    w0 = 1.0 - w1
    m = np.zeros((out_size, in_size), np.float32)
    m[np.arange(out_size), x0] += w0
    m[np.arange(out_size), x1] += w1
    return m


def _init_params(key):
    h_out, w_out = INPUT_IMAGE_SIZE
    shapes = {
        "w_img": (C * h_out * w_out, OBS_DIM), "b_obs": (1, OBS_DIM), "w_spd": (1, OBS_DIM),
        "w_hh": (HIST_DIM, HIST_DIM), "w_hs": (SAMP_DIM, HIST_DIM),
        "w_ha": (ACTION_DIM, HIST_DIM), "b_h": (1, HIST_DIM),
        "w_zh": (HIST_DIM, SAMP_DIM), "w_zo": (OBS_DIM, SAMP_DIM), "b_z": (1, SAMP_DIM),
        "w_r": (ROUTE_DIM, ROUTE_FEAT), "b_r": (1, ROUTE_FEAT),
        "w_fh": (HIST_DIM, POLY_STATE), "w_fs": (SAMP_DIM, POLY_STATE),
        "w_fr": (ROUTE_FEAT, POLY_STATE), "b_f": (1, POLY_STATE),
        "w_g1s": (POLY_STATE, GEN_HID), "w_g1c": (1, GEN_HID), "w_g1n": (1, GEN_HID),
        "b_g1": (1, GEN_HID),
        "w_g2": (GEN_HID, GEN_ACT), "b_g2": (1, GEN_ACT),
    }
    params = {"resize_h": jnp.asarray(_linear_interp_matrix(H_IN, h_out), F32),
              "resize_w": jnp.asarray(_linear_interp_matrix(W_IN, w_out), F32)}
    keys = jax.random.split(key, len(shapes))
    for k, (name, shp) in zip(keys, sorted(shapes.items())):
        fan_in = shp[0]
        params[name] = (jax.random.normal(k, shp, F32) / np.sqrt(max(fan_in, 1))).astype(F32)
    return params


def _pack_params(raw):
    """Fold the resize into the image-encoder weight and pack everything into 2 bf16 slabs."""
    h_out, w_out = INPUT_IMAGE_SIZE
    L = np.asarray(raw["resize_h"])                 # [h_out, H_IN]
    R = np.asarray(raw["resize_w"])                 # [w_out, W_IN]
    m_chan = np.kron(L, R)                          # [h_out*w_out, H_IN*W_IN] per-channel resize
    w_img = np.asarray(raw["w_img"]).reshape(C, h_out * w_out, OBS_DIM)
    # obs_pre[b,o] = sum_{c,p} img[b, c*HW+p] * (sum_q m_chan[q,p] * w_img[c,q,o])  (exact fold)
    w_img_fused = np.einsum("qp,cqo->cpo", m_chan, w_img).reshape(IMG_FEAT, OBS_DIM)

    w_all = np.zeros((W_ROWS, SLAB_W), np.float32)

    def put(r0, c0, w):
        w = np.asarray(w)
        k, n = w.shape
        w_all[r0:r0 + k, c0:c0 + n] = w

    # block-diagonal stage-1 weight: history block in cols 0:32, route block in cols 32:48
    put(W_HR_OFF, 0, np.concatenate([np.asarray(raw["w_hh"]), np.asarray(raw["w_hs"]),
                                     np.asarray(raw["w_ha"])], axis=0))          # rows 0:54
    put(W_HR_OFF + HIST_DIM + SAMP_DIM + ACTION_DIM, HIST_DIM, raw["w_r"])       # rows 54:70
    # rows 70:80 stay zero -> absorb goal + pad columns of the 80-wide LHS slice
    put(W_Z_OFF, 0, np.concatenate([np.asarray(raw["w_zh"]), np.asarray(raw["w_zo"])], axis=0))
    put(W_F_OFF, 0, np.concatenate([np.asarray(raw["w_fh"]), np.asarray(raw["w_fs"]),
                                    np.asarray(raw["w_fr"])], axis=0))
    put(W_G1_OFF, 0, raw["w_g1s"])
    put(W_G2_OFF, 0, raw["w_g2"])

    # bias / broadcast rows appended at the slab tail
    w_all[ROW_BASE + R_BOBS, 0:OBS_DIM]                     = np.asarray(raw["b_obs"])[0]
    w_all[ROW_BASE + R_BHR,  0:HIST_DIM]                    = np.asarray(raw["b_h"])[0]
    w_all[ROW_BASE + R_BHR,  HIST_DIM:HIST_DIM + ROUTE_FEAT] = np.asarray(raw["b_r"])[0]
    w_all[ROW_BASE + R_BZ,   0:SAMP_DIM]                    = np.asarray(raw["b_z"])[0]
    w_all[ROW_BASE + R_BF,   0:POLY_STATE]                  = np.asarray(raw["b_f"])[0]
    w_all[ROW_BASE + R_BG1,  0:GEN_HID]                     = np.asarray(raw["b_g1"])[0]
    w_all[ROW_BASE + R_BG2,  0:GEN_ACT]                     = np.asarray(raw["b_g2"])[0]
    w_all[ROW_BASE + R_WSPD, 0:OBS_DIM]                     = np.asarray(raw["w_spd"])[0]
    w_all[ROW_BASE + R_WG1C, 0:GEN_HID]                     = np.asarray(raw["w_g1c"])[0]
    w_all[ROW_BASE + R_WG1N, 0:GEN_HID]                     = np.asarray(raw["w_g1n"])[0]

    return {"w_img": jnp.asarray(w_img_fused, BF16),
            "w_all": jnp.asarray(w_all, BF16)}


# ---------------------------------- pure-JAX reference ------------------------------------
def _reference_forward(raw, image, route, speed, action_input, history_input,
                       sample_input, goal_heading):
    p = raw
    img = jnp.squeeze(image, axis=0)                                          # [B, C, H, W]
    # explicit separable bilinear resize in f32 (validates the in-kernel weight folding)
    resized = jnp.einsum("oh,bchw,pw->bcop", p["resize_h"], img, p["resize_w"])
    obs = jax.nn.relu(resized.reshape(B, -1) @ p["w_img"] + speed * p["w_spd"] + p["b_obs"])
    history = jnp.tanh(history_input @ p["w_hh"] + sample_input @ p["w_hs"]
                       + action_input @ p["w_ha"] + p["b_h"])
    sample = jnp.tanh(history @ p["w_zh"] + obs @ p["w_zo"] + p["b_z"])
    route_feat = jax.nn.relu(route.reshape(-1, ROUTE_DIM) @ p["w_r"] + p["b_r"])
    base_state = jax.nn.relu(history @ p["w_fh"] + sample @ p["w_fs"]
                             + route_feat @ p["w_fr"] + p["b_f"])
    hidden = jax.nn.relu(base_state @ p["w_g1s"] + jnp.cos(goal_heading) * p["w_g1c"]
                         + jnp.sin(goal_heading) * p["w_g1n"] + p["b_g1"])
    gen_action = jnp.tanh(hidden @ p["w_g2"] + p["b_g2"])
    return gen_action, history, sample


# -------------------------------------- main ----------------------------------------------
if __name__ == "__main__":
    root = jax.random.PRNGKey(0)
    k_params, k_img, k_route, k_spd, k_act, k_hist, k_samp, k_goal = jax.random.split(root, 8)

    raw_params = _init_params(k_params)
    packed_params = _pack_params(raw_params)

    image         = jax.random.normal(k_img,   (1, B, C, H_IN, W_IN), F32)
    route         = jax.random.normal(k_route, (B, 1, ROUTE_DIM), F32)
    speed         = jax.random.normal(k_spd,   (B, 1), F32)
    action_input  = jax.random.normal(k_act,   (B, ACTION_DIM), F32)
    history_input = jax.random.normal(k_hist,  (B, HIST_DIM), F32)
    sample_input  = jax.random.normal(k_samp,  (B, SAMP_DIM), F32)
    goal_heading  = jax.random.uniform(k_goal, (B, 1), F32, -np.pi, np.pi)

    gen_action, history, sample = jax.block_until_ready(
        generalist_policy_inference(packed_params, image, route, speed, action_input,
                                    history_input, sample_input, goal_heading))

    ref_action, ref_history, ref_sample = _reference_forward(
        raw_params, image, route, speed, action_input, history_input, sample_input, goal_heading)

    assert gen_action.shape == (B, GEN_ACT) and history.shape == (B, HIST_DIM) \
        and sample.shape == (B, SAMP_DIM)
    np.testing.assert_allclose(np.asarray(gen_action), np.asarray(ref_action), rtol=2e-2, atol=2e-2)
    np.testing.assert_allclose(np.asarray(history),    np.asarray(ref_history), rtol=2e-2, atol=2e-2)
    np.testing.assert_allclose(np.asarray(sample),     np.asarray(ref_sample),  rtol=2e-2, atol=2e-2)

    print("KERNEL_OK")
</pallas_src>

<mosaic_0001>
module attributes {stable_mosaic.version = 11 : i64} {
  func.func @_policy_kernel(%arg0: memref<2x896xbf16, #tpu.memory_space<vmem>>, %arg1: memref<768x32xbf16, #tpu.memory_space<vmem>>, %arg2: memref<320x64xbf16, #tpu.memory_space<vmem>>, %arg3: memref<2x128xf32, #tpu.memory_space<vmem>>) attributes {dimension_semantics = [], scalar_prefetch = 0 : i64, scratch_operands = 0 : i64, tpu.core_type = #tpu.core_type<tc>} {
    %c0 = arith.constant 0 : index
    %c768 = arith.constant 768 : index
    %0 = vector.load %arg0[%c0, %c768] : memref<2x896xbf16, #tpu.memory_space<vmem>>, vector<2x1xbf16>
    %1 = arith.extf %0 : vector<2x1xbf16> to vector<2x1xf32>
    %c0_0 = arith.constant 0 : index
    %c839 = arith.constant 839 : index
    %2 = vector.load %arg0[%c0_0, %c839] : memref<2x896xbf16, #tpu.memory_space<vmem>>, vector<2x1xbf16>
    %3 = arith.extf %2 : vector<2x1xbf16> to vector<2x1xf32>
    %c0_1 = arith.constant 0 : index
    %c0_2 = arith.constant 0 : index
    %4 = vector.load %arg0[%c0_1, %c0_2] : memref<2x896xbf16, #tpu.memory_space<vmem>>, vector<2x768xbf16>
    %c0_3 = arith.constant 0 : index
    %c0_4 = arith.constant 0 : index
    %5 = vector.load %arg1[%c0_3, %c0_4] : memref<768x32xbf16, #tpu.memory_space<vmem>>, vector<768x32xbf16>
    %cst = arith.constant dense<0.000000e+00> : vector<2x32xf32>
    %6 = tpu.matmul %4, %5, %cst {dimension_numbers = #tpu.dot_dimension_numbers<[1], [0], [0], [1], [0, 0, 1, 1], [], []>} : vector<2x768xbf16>, vector<768x32xbf16>, vector<2x32xf32> -> vector<2x32xf32>
    %c310 = arith.constant 310 : index
    %c0_5 = arith.constant 0 : index
    %7 = vector.load %arg2[%c310, %c0_5] : memref<320x64xbf16, #tpu.memory_space<vmem>>, vector<1x32xbf16>
    %8 = arith.extf %7 : vector<1x32xbf16> to vector<1x32xf32>
    %9 = vector.broadcast %1 : vector<2x1xf32> to vector<2x32xf32>
    %10 = vector.broadcast %8 : vector<1x32xf32> to vector<2x32xf32>
    %11 = arith.mulf %9, %10 : vector<2x32xf32>
    %12 = arith.addf %6, %11 : vector<2x32xf32>
    %c304 = arith.constant 304 : index
    %c0_6 = arith.constant 0 : index
    %13 = vector.load %arg2[%c304, %c0_6] : memref<320x64xbf16, #tpu.memory_space<vmem>>, vector<1x32xbf16>
    %14 = arith.extf %13 : vector<1x32xbf16> to vector<1x32xf32>
    %15 = vector.broadcast %14 : vector<1x32xf32> to vector<2x32xf32>
    %16 = arith.addf %12, %15 : vector<2x32xf32>
    %cst_7 = arith.constant 0.000000e+00 : f32
    %17 = vector.broadcast %cst_7 : f32 to vector<2x32xf32>
    %18 = arith.maximumf %16, %17 : vector<2x32xf32>
    %c0_8 = arith.constant 0 : index
    %c769 = arith.constant 769 : index
    %19 = vector.load %arg0[%c0_8, %c769] : memref<2x896xbf16, #tpu.memory_space<vmem>>, vector<2x80xbf16>
    %c0_9 = arith.constant 0 : index
    %c0_10 = arith.constant 0 : index
    %20 = vector.load %arg2[%c0_9, %c0_10] : memref<320x64xbf16, #tpu.memory_space<vmem>>, vector<80x48xbf16>
    %cst_11 = arith.constant dense<0.000000e+00> : vector<2x48xf32>
    %21 = tpu.matmul %19, %20, %cst_11 {dimension_numbers = #tpu.dot_dimension_numbers<[1], [0], [0], [1], [0, 0, 1, 1], [], []>} : vector<2x80xbf16>, vector<80x48xbf16>, vector<2x48xf32> -> vector<2x48xf32>
    %c305 = arith.constant 305 : index
    %c0_12 = arith.constant 0 : index
    %22 = vector.load %arg2[%c305, %c0_12] : memref<320x64xbf16, #tpu.memory_space<vmem>>, vector<1x48xbf16>
    %23 = arith.extf %22 : vector<1x48xbf16> to vector<1x48xf32>
    %24 = vector.broadcast %23 : vector<1x48xf32> to vector<2x48xf32>
    %25 = arith.addf %21, %24 : vector<2x48xf32>
    %26 = vector.extract_strided_slice %25 {offsets = [0, 0], sizes = [2, 32], strides = [1, 1]} : vector<2x48xf32> to vector<2x32xf32>
    %27 = math.tanh %26 : vector<2x32xf32>
    %28 = vector.extract_strided_slice %25 {offsets = [0, 32], sizes = [2, 16], strides = [1, 1]} : vector<2x48xf32> to vector<2x16xf32>
    %cst_13 = arith.constant 0.000000e+00 : f32
    %29 = vector.broadcast %cst_13 : f32 to vector<2x16xf32>
    %30 = arith.maximumf %28, %29 : vector<2x16xf32>
    %31 = tpu.concatenate %27, %18 in 1 : vector<2x32xf32>, vector<2x32xf32> -> vector<2x64xf32>
    %c80 = arith.constant 80 : index
    %c0_14 = arith.constant 0 : index
    %32 = vector.load %arg2[%c80, %c0_14] : memref<320x64xbf16, #tpu.memory_space<vmem>>, vector<64x16xbf16>
    %33 = arith.truncf %31 : vector<2x64xf32> to vector<2x64xbf16>
    %cst_15 = arith.constant dense<0.000000e+00> : vector<2x16xf32>
    %34 = tpu.matmul %33, %32, %cst_15 {dimension_numbers = #tpu.dot_dimension_numbers<[1], [0], [0], [1], [0, 0, 1, 1], [], []>} : vector<2x64xbf16>, vector<64x16xbf16>, vector<2x16xf32> -> vector<2x16xf32>
    %c306 = arith.constant 306 : index
    %c0_16 = arith.constant 0 : index
    %35 = vector.load %arg2[%c306, %c0_16] : memref<320x64xbf16, #tpu.memory_space<vmem>>, vector<1x16xbf16>
    %36 = arith.extf %35 : vector<1x16xbf16> to vector<1x16xf32>
    %37 = vector.broadcast %36 : vector<1x16xf32> to vector<2x16xf32>
    %38 = arith.addf %34, %37 : vector<2x16xf32>
    %39 = math.tanh %38 : vector<2x16xf32>
    %40 = tpu.concatenate %27, %39, %30 in 1 : vector<2x32xf32>, vector<2x16xf32>, vector<2x16xf32> -> vector<2x64xf32>
    %c144 = arith.constant 144 : index
    %c0_17 = arith.constant 0 : index
    %41 = vector.load %arg2[%c144, %c0_17] : memref<320x64xbf16, #tpu.memory_space<vmem>>, vector<64x32xbf16>
    %42 = arith.truncf %40 : vector<2x64xf32> to vector<2x64xbf16>
    %cst_18 = arith.constant dense<0.000000e+00> : vector<2x32xf32>
    %43 = tpu.matmul %42, %41, %cst_18 {dimension_numbers = #tpu.dot_dimension_numbers<[1], [0], [0], [1], [0, 0, 1, 1], [], []>} : vector<2x64xbf16>, vector<64x32xbf16>, vector<2x32xf32> -> vector<2x32xf32>
    %c307 = arith.constant 307 : index
    %c0_19 = arith.constant 0 : index
    %44 = vector.load %arg2[%c307, %c0_19] : memref<320x64xbf16, #tpu.memory_space<vmem>>, vector<1x32xbf16>
    %45 = arith.extf %44 : vector<1x32xbf16> to vector<1x32xf32>
    %46 = vector.broadcast %45 : vector<1x32xf32> to vector<2x32xf32>
    %47 = arith.addf %43, %46 : vector<2x32xf32>
    %cst_20 = arith.constant 0.000000e+00 : f32
    %48 = vector.broadcast %cst_20 : f32 to vector<2x32xf32>
    %49 = arith.maximumf %47, %48 : vector<2x32xf32>
    %c208 = arith.constant 208 : index
    %c0_21 = arith.constant 0 : index
    %50 = vector.load %arg2[%c208, %c0_21] : memref<320x64xbf16, #tpu.memory_space<vmem>>, vector<32x64xbf16>
    %51 = arith.truncf %49 : vector<2x32xf32> to vector<2x32xbf16>
    %cst_22 = arith.constant dense<0.000000e+00> : vector<2x64xf32>
    %52 = tpu.matmul %51, %50, %cst_22 {dimension_numbers = #tpu.dot_dimension_numbers<[1], [0], [0], [1], [0, 0, 1, 1], [], []>} : vector<2x32xbf16>, vector<32x64xbf16>, vector<2x64xf32> -> vector<2x64xf32>
    %53 = math.cos %3 : vector<2x1xf32>
    %c311 = arith.constant 311 : index
    %c0_23 = arith.constant 0 : index
    %54 = vector.load %arg2[%c311, %c0_23] : memref<320x64xbf16, #tpu.memory_space<vmem>>, vector<1x64xbf16>
    %55 = arith.extf %54 : vector<1x64xbf16> to vector<1x64xf32>
    %56 = vector.broadcast %53 : vector<2x1xf32> to vector<2x64xf32>
    %57 = vector.broadcast %55 : vector<1x64xf32> to vector<2x64xf32>
    %58 = arith.mulf %56, %57 : vector<2x64xf32>
    %59 = arith.addf %52, %58 : vector<2x64xf32>
    %60 = math.sin %3 : vector<2x1xf32>
    %c312 = arith.constant 312 : index
    %c0_24 = arith.constant 0 : index
    %61 = vector.load %arg2[%c312, %c0_24] : memref<320x64xbf16, #tpu.memory_space<vmem>>, vector<1x64xbf16>
    %62 = arith.extf %61 : vector<1x64xbf16> to vector<1x64xf32>
    %63 = vector.broadcast %60 : vector<2x1xf32> to vector<2x64xf32>
    %64 = vector.broadcast %62 : vector<1x64xf32> to vector<2x64xf32>
    %65 = arith.mulf %63, %64 : vector<2x64xf32>
    %66 = arith.addf %59, %65 : vector<2x64xf32>
    %c308 = arith.constant 308 : index
    %c0_25 = arith.constant 0 : index
    %67 = vector.load %arg2[%c308, %c0_25] : memref<320x64xbf16, #tpu.memory_space<vmem>>, vector<1x64xbf16>
    %68 = arith.extf %67 : vector<1x64xbf16> to vector<1x64xf32>
    %69 = vector.broadcast %68 : vector<1x64xf32> to vector<2x64xf32>
    %70 = arith.addf %66, %69 : vector<2x64xf32>
    %cst_26 = arith.constant 0.000000e+00 : f32
    %71 = vector.broadcast %cst_26 : f32 to vector<2x64xf32>
    %72 = arith.maximumf %70, %71 : vector<2x64xf32>
    %c240 = arith.constant 240 : index
    %c0_27 = arith.constant 0 : index
    %73 = vector.load %arg2[%c240, %c0_27] : memref<320x64xbf16, #tpu.memory_space<vmem>>, vector<64x6xbf16>
    %74 = arith.truncf %72 : vector<2x64xf32> to vector<2x64xbf16>
    %cst_28 = arith.constant dense<0.000000e+00> : vector<2x6xf32>
    %75 = tpu.matmul %74, %73, %cst_28 {dimension_numbers = #tpu.dot_dimension_numbers<[1], [0], [0], [1], [0, 0, 1, 1], [], []>} : vector<2x64xbf16>, vector<64x6xbf16>, vector<2x6xf32> -> vector<2x6xf32>
    %c309 = arith.constant 309 : index
    %c0_29 = arith.constant 0 : index
    %76 = vector.load %arg2[%c309, %c0_29] : memref<320x64xbf16, #tpu.memory_space<vmem>>, vector<1x6xbf16>
    %77 = arith.extf %76 : vector<1x6xbf16> to vector<1x6xf32>
    %78 = vector.broadcast %77 : vector<1x6xf32> to vector<2x6xf32>
    %79 = arith.addf %75, %78 : vector<2x6xf32>
    %80 = math.tanh %79 : vector<2x6xf32>
    %cst_30 = arith.constant 0.000000e+00 : f32
    %81 = vector.broadcast %cst_30 : f32 to vector<2x74xf32>
    %82 = tpu.concatenate %80, %27, %39, %81 in 1 : vector<2x6xf32>, vector<2x32xf32>, vector<2x16xf32>, vector<2x74xf32> -> vector<2x128xf32>
    %c0_31 = arith.constant 0 : index
    %c0_32 = arith.constant 0 : index
    %83 = vector.load %arg3[%c0_31, %c0_32] : memref<2x128xf32, #tpu.memory_space<vmem>>, vector<2x128xf32>
    tpu.vector_store %arg3[%c0_31, %c0_32], %82 {strides = array<i32>} : memref<2x128xf32, #tpu.memory_space<vmem>>, vector<2x128xf32>,
    return
  }
}

</mosaic_0001>

<llo_original>
// kernel: tpu_custom_call.1
$region0: #{tpu_custom_call.1}
  #allocation0 [shape = 'u32[]', space=smem, size = 0x4, offset = 0x4, fixed_abs, tag = 'smem constant byte address 0x4 - core index']
  #allocation1 [shape = 'u32[144,128]{1,0:T(1,128)}', space=vmem, size = 0x12000, scoped, tag = 'internal scratch']
  %s0 = inlined_call_operand.vmem [shape: bf16[2,896], index: 0, kind: input, shape index: {}]
  %s1 = inlined_call_operand.vmem [shape: bf16[768,32], index: 1, kind: input, shape index: {}]
  %s2 = inlined_call_operand.vmem [shape: bf16[320,64], index: 2, kind: input, shape index: {}]
  %s3 = inlined_call_operand.hbm [shape: f32[2,128], index: 3, kind: output, shape index: {}]
  %s4 = sld [smem:[#allocation0]]
  $region22: #{tpu_custom_call.1} parent=0
    _
  %s6 = ssub.s32 1, %s4
  %s7 = scalar_select 0, %s6, %s4
  $region1: #{tpu_custom_call.1} parent=0
    #allocation2 [shape = 'u8[1024]{0}', space=vmem, size = 0x400, scoped, tag = 'output window, operand 0, single buffered']
    #allocation3 [shape = 's32[1]{0}', space=sflag, size = 0x4, scoped, tag = 'scoped memory for tpu_custom_call.1']
    %8 = vsyncpa [#allocation3], 0
    // Predicated region
    $region2: #{tpu_custom_call.1} parent=1 // pred_check
      _
    $region3: #{tpu_custom_call.1} parent=1 // pred_check_branch
      %10 = sbr.rel (0) target = $region5
    $region4: #{tpu_custom_call.1} parent=1 // pred_region
      _
    $region5: #{tpu_custom_call.1} parent=1 // pred_fallthru
      _
    // Predicated region
    $region6: #{tpu_custom_call.1} parent=1 // pred_check
      _
    $region7: #{tpu_custom_call.1} parent=1 // pred_check_branch
      %12 = sbr.rel (0) target = $region9
    $region8: #{tpu_custom_call.1} parent=1 // pred_region
      _
    $region9: #{tpu_custom_call.1} parent=1 // pred_fallthru
      _
    // Predicated region
    $region10: #{tpu_custom_call.1} parent=1 // pred_check
      _
    $region11: #{tpu_custom_call.1} parent=1 // pred_check_branch
      %14 = sbr.rel (0) target = $region13
    $region12: #{tpu_custom_call.1} parent=1 // pred_region
      _
    $region13: #{tpu_custom_call.1} parent=1 // pred_fallthru
      _
    %v16 = vld [vmem:[%s0 + $0x6] sm:$0x1]
    %v17 = vunpack.c.l.bf16 %v16
    %v18 = vld [vmem:[%s0] sm:$0x3f]
    %v19 = vld [vmem:[%s1] sm:$0xf]
    %v20 = vld [vmem:[%s1 + $0x4] sm:$0xf]
    %v21 = vld [vmem:[%s1 + $0x8] sm:$0xf]
    %v22 = vld [vmem:[%s1 + $0xc] sm:$0xf]
    %v23 = vld [vmem:[%s1 + $0x10] sm:$0xf]
    %v24 = vld [vmem:[%s1 + $0x14] sm:$0xf]
    %v25 = vld [vmem:[%s1 + $0x18] sm:$0xf]
    %v26 = vld [vmem:[%s1 + $0x1c] sm:$0xf]
    %v27 = vld [vmem:[%s1 + $0x20] sm:$0xf]
    %v28 = vld [vmem:[%s1 + $0x24] sm:$0xf]
    %v29 = vld [vmem:[%s1 + $0x28] sm:$0xf]
    %v30 = vld [vmem:[%s1 + $0x2c] sm:$0xf]
    %v31 = vld [vmem:[%s1 + $0x30] sm:$0xf]
    %v32 = vld [vmem:[%s1 + $0x34] sm:$0xf]
    %v33 = vld [vmem:[%s1 + $0x38] sm:$0xf]
    %v34 = vld [vmem:[%s1 + $0x3c] sm:$0xf]
    %v35 = vld [vmem:[%s1 + $0x40] sm:$0xf]
    %v36 = vld [vmem:[%s1 + $0x44] sm:$0xf]
    %v37 = vld [vmem:[%s1 + $0x48] sm:$0xf]
    %v38 = vld [vmem:[%s1 + $0x4c] sm:$0xf]
    %v39 = vld [vmem:[%s1 + $0x50] sm:$0xf]
    %v40 = vld [vmem:[%s1 + $0x54] sm:$0xf]
    %v41 = vld [vmem:[%s1 + $0x58] sm:$0xf]
    %v42 = vld [vmem:[%s1 + $0x5c] sm:$0xf]
    %v43 = vld [vmem:[%s1 + $0x60] sm:$0xf]
    %v44 = vld [vmem:[%s1 + $0x64] sm:$0xf]
    %v45 = vld [vmem:[%s1 + $0x68] sm:$0xf]
    %v46 = vld [vmem:[%s1 + $0x6c] sm:$0xf]
    %v47 = vld [vmem:[%s1 + $0x70] sm:$0xf]
    %v48 = vld [vmem:[%s1 + $0x74] sm:$0xf]
    %v49 = vld [vmem:[%s1 + $0x78] sm:$0xf]
    %v50 = vld [vmem:[%s1 + $0x7c] sm:$0xf]
    %v51 = vld [vmem:[%s1 + $0x80] sm:$0xf]
    %v52 = vld [vmem:[%s1 + $0x84] sm:$0xf]
    %v53 = vld [vmem:[%s1 + $0x88] sm:$0xf]
    %v54 = vld [vmem:[%s1 + $0x8c] sm:$0xf]
    %v55 = vld [vmem:[%s1 + $0x90] sm:$0xf]
    %v56 = vld [vmem:[%s1 + $0x94] sm:$0xf]
    %v57 = vld [vmem:[%s1 + $0x98] sm:$0xf]
    %v58 = vld [vmem:[%s1 + $0x9c] sm:$0xf]
    %v59 = vld [vmem:[%s1 + $0xa0] sm:$0xf]
    %v60 = vld [vmem:[%s1 + $0xa4] sm:$0xf]
    %v61 = vld [vmem:[%s1 + $0xa8] sm:$0xf]
    %v62 = vld [vmem:[%s1 + $0xac] sm:$0xf]
    %v63 = vld [vmem:[%s1 + $0xb0] sm:$0xf]
    %v64 = vld [vmem:[%s1 + $0xb4] sm:$0xf]
    %v65 = vld [vmem:[%s1 + $0xb8] sm:$0xf]
    %v66 = vld [vmem:[%s1 + $0xbc] sm:$0xf]
    %v67 = vld [vmem:[%s1 + $0xc0] sm:$0xf]
    %v68 = vld [vmem:[%s1 + $0xc4] sm:$0xf]
    %v69 = vld [vmem:[%s1 + $0xc8] sm:$0xf]
    %v70 = vld [vmem:[%s1 + $0xcc] sm:$0xf]
    %v71 = vld [vmem:[%s1 + $0xd0] sm:$0xf]
    %v72 = vld [vmem:[%s1 + $0xd4] sm:$0xf]
    %v73 = vld [vmem:[%s1 + $0xd8] sm:$0xf]
    %v74 = vld [vmem:[%s1 + $0xdc] sm:$0xf]
    %v75 = vld [vmem:[%s1 + $0xe0] sm:$0xf]
    %v76 = vld [vmem:[%s1 + $0xe4] sm:$0xf]
    %v77 = vld [vmem:[%s1 + $0xe8] sm:$0xf]
    %v78 = vld [vmem:[%s1 + $0xec] sm:$0xf]
    %v79 = vld [vmem:[%s1 + $0xf0] sm:$0xf]
    %v80 = vld [vmem:[%s1 + $0xf4] sm:$0xf]
    %v81 = vld [vmem:[%s1 + $0xf8] sm:$0xf]
    %v82 = vld [vmem:[%s1 + $0xfc] sm:$0xf]
    %v83 = vld [vmem:[%s1 + $0x100] sm:$0xf]
    %v84 = vld [vmem:[%s1 + $0x104] sm:$0xf]
    %v85 = vld [vmem:[%s1 + $0x108] sm:$0xf]
    %v86 = vld [vmem:[%s1 + $0x10c] sm:$0xf]
    %v87 = vld [vmem:[%s1 + $0x110] sm:$0xf]
    %v88 = vld [vmem:[%s1 + $0x114] sm:$0xf]
    %v89 = vld [vmem:[%s1 + $0x118] sm:$0xf]
    %v90 = vld [vmem:[%s1 + $0x11c] sm:$0xf]
    %v91 = vld [vmem:[%s1 + $0x120] sm:$0xf]
    %v92 = vld [vmem:[%s1 + $0x124] sm:$0xf]
    %v93 = vld [vmem:[%s1 + $0x128] sm:$0xf]
    %v94 = vld [vmem:[%s1 + $0x12c] sm:$0xf]
    %v95 = vld [vmem:[%s1 + $0x130] sm:$0xf]
    %v96 = vld [vmem:[%s1 + $0x134] sm:$0xf]
    %v97 = vld [vmem:[%s1 + $0x138] sm:$0xf]
    %v98 = vld [vmem:[%s1 + $0x13c] sm:$0xf]
    %v99 = vld [vmem:[%s1 + $0x140] sm:$0xf]
    %v100 = vld [vmem:[%s1 + $0x144] sm:$0xf]
    %v101 = vld [vmem:[%s1 + $0x148] sm:$0xf]
    %v102 = vld [vmem:[%s1 + $0x14c] sm:$0xf]
    %v103 = vld [vmem:[%s1 + $0x150] sm:$0xf]
    %v104 = vld [vmem:[%s1 + $0x154] sm:$0xf]
    %v105 = vld [vmem:[%s1 + $0x158] sm:$0xf]
    %v106 = vld [vmem:[%s1 + $0x15c] sm:$0xf]
    %v107 = vld [vmem:[%s1 + $0x160] sm:$0xf]
    %v108 = vld [vmem:[%s1 + $0x164] sm:$0xf]
    %v109 = vld [vmem:[%s1 + $0x168] sm:$0xf]
    %v110 = vld [vmem:[%s1 + $0x16c] sm:$0xf]
    %v111 = vld [vmem:[%s1 + $0x170] sm:$0xf]
    %v112 = vld [vmem:[%s1 + $0x174] sm:$0xf]
    %v113 = vld [vmem:[%s1 + $0x178] sm:$0xf]
    %v114 = vld [vmem:[%s1 + $0x17c] sm:$0xf]
    %v115 = vld [vmem:[%s2 + $0x98] sm:$0x8]
    %v116 = vunpack.c.l.bf16 %v115
    %118 = vset.pattern.permute.xlu0 0
    %119 = vperm.xlu0 %118, %v17
    %v120 = vpop.permute.xlu0 %119
    %v123 = vunpack.c.l.s4 269488144
    %v124 = vunpack.c.0.s8 %v123
    %v125 = vlaneseq
    %v126 = vshrl.u32 %v125, 7
    %v127 = vsub.s32 %v124, %v126
    %v128 = vrot.slane %v120, %v127
    %v129 = vlaneseq
    %v130 = vshrl.u32 %v129, 7
    %v131 = vsub.s32 6, %v130
    %v132 = vrot.slane %v116, %v131
    %v133 = vmul.f32 %v128, %v132
    %v135 = vcombine.high %v18, %v18
    %v137 = vunpack.c.l.s4 1966171168
    %v138 = vunpack.c.0.s8 %v137
    %v139 = vlaneseq
    %v140 = vshrl.u32 %v139, 7
    %v141 = vsub.s32 %v138, %v140
    %v142 = vrot.slane %v18, %v141
    %v144 = vunpack.c.l.s4 1966171168
    %v145 = vunpack.c.0.s8 %v144
    %v146 = vlaneseq
    %v147 = vshrl.u32 %v146, 7
    %v148 = vsub.s32 %v145, %v147
    %v149 = vrot.slane %v135, %v148
    %v150 = vcombine.high %v142, %v142
    %v151 = vcombine.high %v149, %v149
    %v153 = vunpack.c.l.s4 1966171168
    %v154 = vunpack.c.0.s8 %v153
    %v155 = vlaneseq
    %v156 = vshrl.u32 %v155, 7
    %v157 = vsub.s32 %v154, %v156
    %v158 = vrot.slane %v142, %v157
    %v160 = vunpack.c.l.s4 1966171168
    %v161 = vunpack.c.0.s8 %v160
    %v162 = vlaneseq
    %v163 = vshrl.u32 %v162, 7
    %v164 = vsub.s32 %v161, %v163
    %v165 = vrot.slane %v149, %v164
    %v167 = vunpack.c.l.s4 1966171168
    %v168 = vunpack.c.0.s8 %v167
    %v169 = vlaneseq
    %v170 = vshrl.u32 %v169, 7
    %v171 = vsub.s32 %v168, %v170
    %v172 = vrot.slane %v150, %v171
    %v174 = vunpack.c.l.s4 1966171168
    %v175 = vunpack.c.0.s8 %v174
    %v176 = vlaneseq
    %v177 = vshrl.u32 %v176, 7
    %v178 = vsub.s32 %v175, %v177
    %v179 = vrot.slane %v151, %v178
    %v180 = vcombine.high %v158, %v158
    %v181 = vcombine.high %v172, %v172
    %v284 = vunpack.c.l.b16 %v19
    %v285 = vunpack.c.l.b16 %v20
    %v286 = vunpack.c.l.b16 %v21
    %v287 = vunpack.c.l.b16 %v22
    %v288 = vunpack.c.l.b16 %v23
    %v289 = vunpack.c.l.b16 %v24
    %v290 = vunpack.c.l.b16 %v25
    %v291 = vunpack.c.l.b16 %v26
    %v292 = vunpack.c.l.b16 %v27
    %v293 = vunpack.c.l.b16 %v28
    %v294 = vunpack.c.l.b16 %v29
    %v295 = vunpack.c.l.b16 %v30
    %v296 = vunpack.c.l.b16 %v31
    %v297 = vunpack.c.l.b16 %v32
    %v298 = vunpack.c.l.b16 %v33
    %v299 = vunpack.c.l.b16 %v34
    %v300 = vunpack.c.l.b16 %v35
    %v301 = vunpack.c.l.b16 %v36
    %v302 = vunpack.c.l.b16 %v37
    %v303 = vunpack.c.l.b16 %v38
    %v304 = vunpack.c.l.b16 %v39
    %v305 = vunpack.c.l.b16 %v40
    %v306 = vunpack.c.l.b16 %v41
    %v307 = vunpack.c.l.b16 %v42
    %v308 = vunpack.c.l.b16 %v43
    %v309 = vunpack.c.l.b16 %v44
    %v310 = vunpack.c.l.b16 %v45
    %v311 = vunpack.c.l.b16 %v46
    %v312 = vunpack.c.l.b16 %v47
    %v313 = vunpack.c.l.b16 %v48
    %v314 = vunpack.c.l.b16 %v49
    %v315 = vunpack.c.l.b16 %v50
    %v316 = vunpack.c.l.b16 %v51
    %v317 = vunpack.c.l.b16 %v52
    %v318 = vunpack.c.l.b16 %v53
    %v319 = vunpack.c.l.b16 %v54
    %v320 = vunpack.c.l.b16 %v55
    %v321 = vunpack.c.l.b16 %v56
    %v322 = vunpack.c.l.b16 %v57
    %v323 = vunpack.c.l.b16 %v58
    %v324 = vunpack.c.l.b16 %v59
    %v325 = vunpack.c.l.b16 %v60
    %v326 = vunpack.c.l.b16 %v61
    %v327 = vunpack.c.l.b16 %v62
    %v328 = vunpack.c.l.b16 %v63
    %v329 = vunpack.c.l.b16 %v64
    %v330 = vunpack.c.l.b16 %v65
    %v331 = vunpack.c.l.b16 %v66
    %v332 = vunpack.c.l.b16 %v67
    %v333 = vunpack.c.l.b16 %v68
    %v334 = vunpack.c.l.b16 %v69
    %v335 = vunpack.c.l.b16 %v70
    %v336 = vunpack.c.l.b16 %v71
    %v337 = vunpack.c.l.b16 %v72
    %v338 = vunpack.c.l.b16 %v73
    %v339 = vunpack.c.l.b16 %v74
    %v340 = vunpack.c.l.b16 %v75
    %v341 = vunpack.c.l.b16 %v76
    %v342 = vunpack.c.l.b16 %v77
    %v343 = vunpack.c.l.b16 %v78
    %v344 = vunpack.c.l.b16 %v79
    %v345 = vunpack.c.l.b16 %v80
    %v346 = vunpack.c.l.b16 %v81
    %v347 = vunpack.c.l.b16 %v82
    %v348 = vunpack.c.l.b16 %v83
    %v349 = vunpack.c.l.b16 %v84
    %v350 = vunpack.c.l.b16 %v85
    %v351 = vunpack.c.l.b16 %v86
    %v352 = vunpack.c.l.b16 %v87
    %v353 = vunpack.c.l.b16 %v88
    %v354 = vunpack.c.l.b16 %v89
    %v355 = vunpack.c.l.b16 %v90
    %v356 = vunpack.c.l.b16 %v91
    %v357 = vunpack.c.l.b16 %v92
    %v358 = vunpack.c.l.b16 %v93
    %v359 = vunpack.c.l.b16 %v94
    %v360 = vunpack.c.l.b16 %v95
    %v361 = vunpack.c.l.b16 %v96
    %v362 = vunpack.c.l.b16 %v97
    %v363 = vunpack.c.l.b16 %v98
    %v364 = vunpack.c.l.b16 %v99
    %v365 = vunpack.c.l.b16 %v100
    %v366 = vunpack.c.l.b16 %v101
    %v367 = vunpack.c.l.b16 %v102
    %v368 = vunpack.c.l.b16 %v103
    %v369 = vunpack.c.l.b16 %v104
    %v370 = vunpack.c.l.b16 %v105
    %v371 = vunpack.c.l.b16 %v106
    %v372 = vunpack.c.l.b16 %v107
    %v373 = vunpack.c.l.b16 %v108
    %v374 = vunpack.c.l.b16 %v109
    %v375 = vunpack.c.l.b16 %v110
    %v376 = vunpack.c.l.b16 %v111
    %v377 = vunpack.c.l.b16 %v112
    %v378 = vunpack.c.l.b16 %v113
    %v379 = vunpack.c.l.b16 %v114
    %v380 = vpack.c.b16 %v285, %v284
    %v381 = vpack.c.b16 %v287, %v286
    %v382 = vpack.c.b16 %v289, %v288
    %v383 = vpack.c.b16 %v291, %v290
    %v384 = vpack.c.b16 %v293, %v292
    %v385 = vpack.c.b16 %v295, %v294
    %v386 = vpack.c.b16 %v297, %v296
    %v387 = vpack.c.b16 %v299, %v298
    %v388 = vpack.c.b16 %v301, %v300
    %v389 = vpack.c.b16 %v303, %v302
    %v390 = vpack.c.b16 %v305, %v304
    %v391 = vpack.c.b16 %v307, %v306
    %v392 = vpack.c.b16 %v309, %v308
    %v393 = vpack.c.b16 %v311, %v310
    %v394 = vpack.c.b16 %v313, %v312
    %v395 = vpack.c.b16 %v315, %v314
    %v396 = vpack.c.b16 %v317, %v316
    %v397 = vpack.c.b16 %v319, %v318
    %v398 = vpack.c.b16 %v321, %v320
    %v399 = vpack.c.b16 %v323, %v322
    %v400 = vpack.c.b16 %v325, %v324
    %v401 = vpack.c.b16 %v327, %v326
    %v402 = vpack.c.b16 %v329, %v328
    %v403 = vpack.c.b16 %v331, %v330
    %v404 = vpack.c.b16 %v333, %v332
    %v405 = vpack.c.b16 %v335, %v334
    %v406 = vpack.c.b16 %v337, %v336
    %v407 = vpack.c.b16 %v339, %v338
    %v408 = vpack.c.b16 %v341, %v340
    %v409 = vpack.c.b16 %v343, %v342
    %v410 = vpack.c.b16 %v345, %v344
    %v411 = vpack.c.b16 %v347, %v346
    %v412 = vpack.c.b16 %v349, %v348
    %v413 = vpack.c.b16 %v351, %v350
    %v414 = vpack.c.b16 %v353, %v352
    %v415 = vpack.c.b16 %v355, %v354
    %v416 = vpack.c.b16 %v357, %v356
    %v417 = vpack.c.b16 %v359, %v358
    %v418 = vpack.c.b16 %v361, %v360
    %v419 = vpack.c.b16 %v363, %v362
    %v420 = vpack.c.b16 %v365, %v364
    %v421 = vpack.c.b16 %v367, %v366
    %v422 = vpack.c.b16 %v369, %v368
    %v423 = vpack.c.b16 %v371, %v370
    %v424 = vpack.c.b16 %v373, %v372
    %v425 = vpack.c.b16 %v375, %v374
    %v426 = vpack.c.b16 %v377, %v376
    %v427 = vpack.c.b16 %v379, %v378
    %476 = vmatprep.subr.bf16.mxu0 0
    %477 = vmatpush1.bf16.msra.mxu0 %v387
    %478 = vmatprep.subr.bf16.mxu0 0
    %479 = vmatpush1.bf16.msra.mxu0 %v386
    %480 = vmatprep.subr.bf16.mxu0 0
    %481 = vmatpush1.bf16.msra.mxu0 %v385
    %482 = vmatprep.subr.bf16.mxu0 0
    %483 = vmatpush1.bf16.msra.mxu0 %v384
    %484 = vmatprep.subr.bf16.mxu0 0
    %485 = vmatpush1.bf16.msra.mxu0 %v383
    %486 = vmatprep.subr.bf16.mxu0 0
    %487 = vmatpush1.bf16.msra.mxu0 %v382
    %488 = vmatprep.subr.bf16.mxu0 0
    %489 = vmatpush1.bf16.msra.mxu0 %v381
    %490 = vmatprep.subr.bf16.mxu0 0
    %491 = vmatpush1.bf16.msra.mxu0 %v380
    %492 = vmatprep.subr.bf16.mxu0 0
    %493 = vmatpush2.bf16.msra.mxu0 %v395
    %494 = vmatprep.subr.bf16.mxu0 0
    %495 = vmatpush2.bf16.msra.mxu0 %v394
    %496 = vmatprep.subr.bf16.mxu0 0
    %497 = vmatpush2.bf16.msra.mxu0 %v393
    %498 = vmatprep.subr.bf16.mxu0 0
    %499 = vmatpush2.bf16.msra.mxu0 %v392
    %500 = vmatprep.subr.bf16.mxu0 0
    %501 = vmatpush2.bf16.msra.mxu0 %v391
    %502 = vmatprep.subr.bf16.mxu0 0
    %503 = vmatpush2.bf16.msra.mxu0 %v390
    %504 = vmatprep.subr.bf16.mxu0 0
    %505 = vmatpush2.bf16.msra.mxu0 %v389
    %506 = vmatprep.subr.bf16.mxu0 0
    %507 = vmatpush2.bf16.msra.mxu0 %v388
    %508 = vmatprep.mubr.bf16.mxu0 %v172
    %509 = vmatmul.mubr.bf16.gmra.mxu0 %v158
    %v510 = vpop.f32.mrf.mxu0
    %v511 = vadd.f32 %v133, %v510
    %v512 = vpop.f32.mrf.mxu0
    %v513 = vpop.f32.mrf.mxu0
    %v514 = vpop.f32.mrf.mxu0
    %515 = vdwg.mxu0
    %516 = vmatprep.subr.bf16.mxu0 0
    %517 = vmatpush1.bf16.msra.mxu0 %v403
    %518 = vmatprep.subr.bf16.mxu0 0
    %519 = vmatpush1.bf16.msra.mxu0 %v402
    %520 = vmatprep.subr.bf16.mxu0 0
    %521 = vmatpush1.bf16.msra.mxu0 %v401
    %522 = vmatprep.subr.bf16.mxu0 0
    %523 = vmatpush1.bf16.msra.mxu0 %v400
    %524 = vmatprep.subr.bf16.mxu0 0
    %525 = vmatpush1.bf16.msra.mxu0 %v399
    %526 = vmatprep.subr.bf16.mxu0 0
    %527 = vmatpush1.bf16.msra.mxu0 %v398
    %528 = vmatprep.subr.bf16.mxu0 0
    %529 = vmatpush1.bf16.msra.mxu0 %v397
    %530 = vmatprep.subr.bf16.mxu0 0
    %531 = vmatpush1.bf16.msra.mxu0 %v396
    %532 = vmatprep.subr.bf16.mxu0 0
    %533 = vmatpush2.bf16.msra.mxu0 %v411
    %534 = vmatprep.subr.bf16.mxu0 0
    %535 = vmatpush2.bf16.msra.mxu0 %v410
    %536 = vmatprep.subr.bf16.mxu0 0
    %537 = vmatpush2.bf16.msra.mxu0 %v409
    %538 = vmatprep.subr.bf16.mxu0 0
    %539 = vmatpush2.bf16.msra.mxu0 %v408
    %540 = vmatprep.subr.bf16.mxu0 0
    %541 = vmatpush2.bf16.msra.mxu0 %v407
    %542 = vmatprep.subr.bf16.mxu0 0
    %543 = vmatpush2.bf16.msra.mxu0 %v406
    %544 = vmatprep.subr.bf16.mxu0 0
    %545 = vmatpush2.bf16.msra.mxu0 %v405
    %546 = vmatprep.subr.bf16.mxu0 0
    %547 = vmatpush2.bf16.msra.mxu0 %v404
    %548 = vmatprep.mubr.bf16.mxu0 %v181
    %549 = vmatmul.mubr.bf16.gmra.mxu0 %v180
    %v550 = vpop.f32.mrf.mxu0
    %v551 = vadd.f32 %v511, %v550
    %v552 = vpop.f32.mrf.mxu0
    %v553 = vpop.f32.mrf.mxu0
    %v554 = vpop.f32.mrf.mxu0
    %555 = vdwg.mxu0
    %556 = vmatprep.subr.bf16.mxu0 0
    %557 = vmatpush1.bf16.msra.mxu0 %v419
    %558 = vmatprep.subr.bf16.mxu0 0
    %559 = vmatpush1.bf16.msra.mxu0 %v418
    %560 = vmatprep.subr.bf16.mxu0 0
    %561 = vmatpush1.bf16.msra.mxu0 %v417
    %562 = vmatprep.subr.bf16.mxu0 0
    %563 = vmatpush1.bf16.msra.mxu0 %v416
    %564 = vmatprep.subr.bf16.mxu0 0
    %565 = vmatpush1.bf16.msra.mxu0 %v415
    %566 = vmatprep.subr.bf16.mxu0 0
    %567 = vmatpush1.bf16.msra.mxu0 %v414
    %568 = vmatprep.subr.bf16.mxu0 0
    %569 = vmatpush1.bf16.msra.mxu0 %v413
    %570 = vmatprep.subr.bf16.mxu0 0
    %571 = vmatpush1.bf16.msra.mxu0 %v412
    %572 = vmatprep.subr.bf16.mxu0 0
    %573 = vmatpush2.bf16.msra.mxu0 %v427
    %574 = vmatprep.subr.bf16.mxu0 0
    %575 = vmatpush2.bf16.msra.mxu0 %v426
    %576 = vmatprep.subr.bf16.mxu0 0
    %577 = vmatpush2.bf16.msra.mxu0 %v425
    %578 = vmatprep.subr.bf16.mxu0 0
    %579 = vmatpush2.bf16.msra.mxu0 %v424
    %580 = vmatprep.subr.bf16.mxu0 0
    %581 = vmatpush2.bf16.msra.mxu0 %v423
    %582 = vmatprep.subr.bf16.mxu0 0
    %583 = vmatpush2.bf16.msra.mxu0 %v422
    %584 = vmatprep.subr.bf16.mxu0 0
    %585 = vmatpush2.bf16.msra.mxu0 %v421
    %586 = vmatprep.subr.bf16.mxu0 0
    %587 = vmatpush2.bf16.msra.mxu0 %v420
    %588 = vmatprep.mubr.bf16.mxu0 %v179
    %589 = vmatmul.mubr.bf16.gmra.mxu0 %v165
    %v590 = vpop.f32.mrf.mxu0
    %v591 = vadd.f32 %v551, %v590
    %v592 = vpop.f32.mrf.mxu0
    %v593 = vpop.f32.mrf.mxu0
    %v594 = vpop.f32.mrf.mxu0
    %595 = vdwg.mxu0
    %v596 = vld [vmem:[%s2 + $0x98] sm:$0x1]
    %v597 = vunpack.c.l.bf16 %v596
    %v598 = vlaneseq
    %v599 = vshrl.u32 %v598, 7
    %v600 = vsub.s32 0, %v599
    %v601 = vrot.slane %v597, %v600
    %v602 = vadd.f32 %v591, %v601
    %v603 = vmax.f32 %v602, 0.0
    %v604 = vld [vmem:[%s0 + $0x6] sm:$0x1]
    %v605 = vld [vmem:[%s2] sm:$0xf]
    %v606 = vld [vmem:[%s2 + $0x4] sm:$0xf]
    %v607 = vld [vmem:[%s2 + $0x8] sm:$0xf]
    %v608 = vld [vmem:[%s2 + $0xc] sm:$0xf]
    %v609 = vld [vmem:[%s2 + $0x10] sm:$0xf]
    %v610 = vld [vmem:[%s2 + $0x14] sm:$0xf]
    %v611 = vld [vmem:[%s2 + $0x18] sm:$0xf]
    %v612 = vld [vmem:[%s2 + $0x1c] sm:$0xf]
    %v613 = vld [vmem:[%s2 + $0x20] sm:$0xf]
    %v614 = vld [vmem:[%s2 + $0x24] sm:$0xf]
    %v615 = vlaneseq
    %v616 = vshrl.u32 %v615, 7
    %v617 = vsub.s32 1, %v616
    %v618 = vrot.slane %v597, %v617
    %v621 = vunpack.c.l.s4 1966171168
    %v622 = vunpack.c.0.s8 %v621
    %v623 = vlaneseq
    %v624 = vshrl.u32 %v623, 7
    %v625 = vsub.s32 %v622, %v624
    %v626 = vrot.slane %v604, %v625
    %v628 = vunpack.c.l.s4 1966171168
    %v629 = vunpack.c.0.s8 %v628
    %v630 = vlaneseq
    %v631 = vshrl.u32 %v630, 7
    %v632 = vsub.s32 %v629, %v631
    %v633 = vrot.slane %v626, %v632
    %634 = vrot.lane.b32.xlu0 %v633, 127
    %v635 = vpop.permute.xlu0 %634
    %v646 = vunpack.c.l.b16 %v605
    %v647 = vunpack.c.l.b16 %v606
    %v648 = vunpack.c.l.b16 %v607
    %v649 = vunpack.c.l.b16 %v608
    %v650 = vunpack.c.l.b16 %v609
    %v651 = vunpack.c.l.b16 %v610
    %v652 = vunpack.c.l.b16 %v611
    %v653 = vunpack.c.l.b16 %v612
    %v654 = vunpack.c.l.b16 %v613
    %v655 = vunpack.c.l.b16 %v614
    %v656 = vpack.c.b16 %v647, %v646
    %v657 = vpack.c.b16 %v649, %v648
    %v658 = vpack.c.b16 %v651, %v650
    %v659 = vpack.c.b16 %v653, %v652
    %v660 = vpack.c.b16 %v655, %v654
    %vm666 = vcmask 654336
    %v668 = vsel %vm666, %v635, 0
    %670 = vmatprep.subr.bf16.mxu0 0
    %671 = vmatpush1.bf16.msra.mxu0 0
    %672 = vmatprep.subr.bf16.mxu0 0
    %673 = vmatpush1.bf16.msra.mxu0 0
    %674 = vmatprep.subr.bf16.mxu0 0
    %675 = vmatpush1.bf16.msra.mxu0 0
    %676 = vmatprep.subr.bf16.mxu0 0
    %677 = vmatpush1.bf16.msra.mxu0 %v660
    %678 = vmatprep.subr.bf16.mxu0 0
    %679 = vmatpush1.bf16.msra.mxu0 %v659
    %680 = vmatprep.subr.bf16.mxu0 0
    %681 = vmatpush1.bf16.msra.mxu0 %v658
    %682 = vmatprep.subr.bf16.mxu0 0
    %683 = vmatpush1.bf16.msra.mxu0 %v657
    %684 = vmatprep.subr.bf16.mxu0 0
    %685 = vmatpush1.bf16.msra.mxu0 %v656
    %686 = vmatprep.subr.bf16.mxu0 0
    %687 = vmatpush2.bf16.msra.mxu0 0
    %688 = vmatprep.subr.bf16.mxu0 0
    %689 = vmatpush2.bf16.msra.mxu0 0
    %690 = vmatprep.subr.bf16.mxu0 0
    %691 = vmatpush2.bf16.msra.mxu0 0
    %692 = vmatprep.subr.bf16.mxu0 0
    %693 = vmatpush2.bf16.msra.mxu0 0
    %694 = vmatprep.subr.bf16.mxu0 0
    %695 = vmatpush2.bf16.msra.mxu0 0
    %696 = vmatprep.subr.bf16.mxu0 0
    %697 = vmatpush2.bf16.msra.mxu0 0
    %698 = vmatprep.subr.bf16.mxu0 0
    %699 = vmatpush2.bf16.msra.mxu0 0
    %700 = vmatprep.subr.bf16.mxu0 0
    %701 = vmatpush2.bf16.msra.mxu0 0
    %702 = vmatprep.mubr.bf16.mxu0 0
    %703 = vmatmul.mubr.bf16.gmra.mxu0 %v668
    %v704 = vpop.f32.mrf.mxu0
    %v705 = vadd.f32 %v618, %v704
    %v706 = vpop.f32.mrf.mxu0
    %v707 = vpop.f32.mrf.mxu0
    %v708 = vpop.f32.mrf.mxu0
    %709 = vdwg.mxu0
    %v710 = vtanh.pop %v705
    %v711 = vmax.f32 %v705, 0.0
    %713 = vrot.lane.b32.xlu0 %v603, 32
    %v714 = vpop.permute.xlu0 %713
    %vm716 = vcmask 261120
    %v717 = vsel %vm716, %v710, %v714
    %v718 = vld [vmem:[%s2 + $0x28] sm:$0xf]
    %v719 = vld [vmem:[%s2 + $0x2c] sm:$0xf]
    %v720 = vld [vmem:[%s2 + $0x30] sm:$0xf]
    %v721 = vld [vmem:[%s2 + $0x34] sm:$0xf]
    %v722 = vld [vmem:[%s2 + $0x38] sm:$0xf]
    %v723 = vld [vmem:[%s2 + $0x3c] sm:$0xf]
    %v724 = vld [vmem:[%s2 + $0x40] sm:$0xf]
    %v725 = vld [vmem:[%s2 + $0x44] sm:$0xf]
    %v726 = vpack.c.bf16 %v717, %v717
    %v727 = vld [vmem:[%s2 + $0x98] sm:$0x2]
    %v728 = vunpack.c.l.bf16 %v727
    %v729 = vlaneseq
    %v730 = vshrl.u32 %v729, 7
    %v731 = vsub.s32 2, %v730
    %v732 = vrot.slane %v728, %v731
    %v741 = vunpack.c.l.b16 %v718
    %v742 = vunpack.c.l.b16 %v719
    %v743 = vunpack.c.l.b16 %v720
    %v744 = vunpack.c.l.b16 %v721
    %v745 = vunpack.c.l.b16 %v722
    %v746 = vunpack.c.l.b16 %v723
    %v747 = vunpack.c.l.b16 %v724
    %v748 = vunpack.c.l.b16 %v725
    %v749 = vpack.c.b16 %v742, %v741
    %v750 = vpack.c.b16 %v744, %v743
    %v751 = vpack.c.b16 %v746, %v745
    %v752 = vpack.c.b16 %v748, %v747
    %vm757 = vcmask 523264
    %v759 = vsel %vm757, %v726, 0
    %761 = vmatprep.subr.bf16.mxu0 0
    %762 = vmatpush1.bf16.msra.mxu0 0
    %763 = vmatprep.subr.bf16.mxu0 0
    %764 = vmatpush1.bf16.msra.mxu0 0
    %765 = vmatprep.subr.bf16.mxu0 0
    %766 = vmatpush1.bf16.msra.mxu0 0
    %767 = vmatprep.subr.bf16.mxu0 0
    %768 = vmatpush1.bf16.msra.mxu0 0
    %769 = vmatprep.subr.bf16.mxu0 0
    %770 = vmatpush1.bf16.msra.mxu0 %v752
    %771 = vmatprep.subr.bf16.mxu0 0
    %772 = vmatpush1.bf16.msra.mxu0 %v751
    %773 = vmatprep.subr.bf16.mxu0 0
    %774 = vmatpush1.bf16.msra.mxu0 %v750
    %775 = vmatprep.subr.bf16.mxu0 0
    %776 = vmatpush1.bf16.msra.mxu0 %v749
    %777 = vmatprep.subr.bf16.mxu0 0
    %778 = vmatpush2.bf16.msra.mxu0 0
    %779 = vmatprep.subr.bf16.mxu0 0
    %780 = vmatpush2.bf16.msra.mxu0 0
    %781 = vmatprep.subr.bf16.mxu0 0
    %782 = vmatpush2.bf16.msra.mxu0 0
    %783 = vmatprep.subr.bf16.mxu0 0
    %784 = vmatpush2.bf16.msra.mxu0 0
    %785 = vmatprep.subr.bf16.mxu0 0
    %786 = vmatpush2.bf16.msra.mxu0 0
    %787 = vmatprep.subr.bf16.mxu0 0
    %788 = vmatpush2.bf16.msra.mxu0 0
    %789 = vmatprep.subr.bf16.mxu0 0
    %790 = vmatpush2.bf16.msra.mxu0 0
    %791 = vmatprep.subr.bf16.mxu0 0
    %792 = vmatpush2.bf16.msra.mxu0 0
    %793 = vmatprep.mubr.bf16.mxu0 0
    %794 = vmatmul.mubr.bf16.gmra.mxu0 %v759
    %v795 = vpop.f32.mrf.mxu0
    %v796 = vadd.f32 %v732, %v795
    %v797 = vpop.f32.mrf.mxu0
    %v798 = vpop.f32.mrf.mxu0
    %v799 = vpop.f32.mrf.mxu0
    %800 = vdwg.mxu0
    %v801 = vtanh.pop %v796
    %803 = vrot.lane.b32.xlu0 %v801, 32
    %v804 = vpop.permute.xlu0 %803
    %807 = vrot.lane.b32.xlu0 %v711, 16
    %v808 = vpop.permute.xlu0 %807
    %v810 = vsel %vm716, %v710, %v804
    %vm811 = vcmask 392192
    %v812 = vsel %vm811, %v810, %v808
    %v813 = vld [vmem:[%s2 + $0x48] sm:$0xf]
    %v814 = vld [vmem:[%s2 + $0x4c] sm:$0xf]
    %v815 = vld [vmem:[%s2 + $0x50] sm:$0xf]
    %v816 = vld [vmem:[%s2 + $0x54] sm:$0xf]
    %v817 = vld [vmem:[%s2 + $0x58] sm:$0xf]
    %v818 = vld [vmem:[%s2 + $0x5c] sm:$0xf]
    %v819 = vld [vmem:[%s2 + $0x60] sm:$0xf]
    %v820 = vld [vmem:[%s2 + $0x64] sm:$0xf]
    %v821 = vpack.c.bf16 %v812, %v812
    %v822 = vlaneseq
    %v823 = vshrl.u32 %v822, 7
    %v824 = vsub.s32 3, %v823
    %v825 = vrot.slane %v728, %v824
    %v834 = vunpack.c.l.b16 %v813
    %v835 = vunpack.c.l.b16 %v814
    %v836 = vunpack.c.l.b16 %v815
    %v837 = vunpack.c.l.b16 %v816
    %v838 = vunpack.c.l.b16 %v817
    %v839 = vunpack.c.l.b16 %v818
    %v840 = vunpack.c.l.b16 %v819
    %v841 = vunpack.c.l.b16 %v820
    %v842 = vpack.c.b16 %v835, %v834
    %v843 = vpack.c.b16 %v837, %v836
    %v844 = vpack.c.b16 %v839, %v838
    %v845 = vpack.c.b16 %v841, %v840
    %v851 = vsel %vm757, %v821, 0
    %853 = vmatprep.subr.bf16.mxu0 0
    %854 = vmatpush1.bf16.msra.mxu0 0
    %855 = vmatprep.subr.bf16.mxu0 0
    %856 = vmatpush1.bf16.msra.mxu0 0
    %857 = vmatprep.subr.bf16.mxu0 0
    %858 = vmatpush1.bf16.msra.mxu0 0
    %859 = vmatprep.subr.bf16.mxu0 0
    %860 = vmatpush1.bf16.msra.mxu0 0
    %861 = vmatprep.subr.bf16.mxu0 0
    %862 = vmatpush1.bf16.msra.mxu0 %v845
    %863 = vmatprep.subr.bf16.mxu0 0
    %864 = vmatpush1.bf16.msra.mxu0 %v844
    %865 = vmatprep.subr.bf16.mxu0 0
    %866 = vmatpush1.bf16.msra.mxu0 %v843
    %867 = vmatprep.subr.bf16.mxu0 0
    %868 = vmatpush1.bf16.msra.mxu0 %v842
    %869 = vmatprep.subr.bf16.mxu0 0
    %870 = vmatpush2.bf16.msra.mxu0 0
    %871 = vmatprep.subr.bf16.mxu0 0
    %872 = vmatpush2.bf16.msra.mxu0 0
    %873 = vmatprep.subr.bf16.mxu0 0
    %874 = vmatpush2.bf16.msra.mxu0 0
    %875 = vmatprep.subr.bf16.mxu0 0
    %876 = vmatpush2.bf16.msra.mxu0 0
    %877 = vmatprep.subr.bf16.mxu0 0
    %878 = vmatpush2.bf16.msra.mxu0 0
    %879 = vmatprep.subr.bf16.mxu0 0
    %880 = vmatpush2.bf16.msra.mxu0 0
    %881 = vmatprep.subr.bf16.mxu0 0
    %882 = vmatpush2.bf16.msra.mxu0 0
    %883 = vmatprep.subr.bf16.mxu0 0
    %884 = vmatpush2.bf16.msra.mxu0 0
    %885 = vmatprep.mubr.bf16.mxu0 0
    %886 = vmatmul.mubr.bf16.gmra.mxu0 %v851
    %v887 = vpop.f32.mrf.mxu0
    %v888 = vadd.f32 %v825, %v887
    %v889 = vpop.f32.mrf.mxu0
    %v890 = vpop.f32.mrf.mxu0
    %v891 = vpop.f32.mrf.mxu0
    %892 = vdwg.mxu0
    %v893 = vmax.f32 %v888, 0.0
    %v894 = vld [vmem:[%s2 + $0x68] sm:$0xf]
    %v895 = vld [vmem:[%s2 + $0x6c] sm:$0xf]
    %v896 = vld [vmem:[%s2 + $0x70] sm:$0xf]
    %v897 = vld [vmem:[%s2 + $0x74] sm:$0xf]
    %v898 = vpack.c.bf16 %v893, %v893
    %v899 = vand.u32 2147483647, %v17
    %vm900 = vcmp.le.f32.partialorder %v899, 0.7853982
    %vm901 = vcmp.lt.s32.totalorder %v17, 0
    %v902 = vand.u32 %v17, 2139095040
    %v903 = vshrl.u32 %v902, 23
    %v904 = vsub.s32 %v903, 127
    %v905 = vand.u32 2147483647, %v17
    %v906 = vand.u32 %v905, 8388607
    %v907 = vor.u32 %v906, 8388608
    %v908 = vsub.s32 0, %v907
    %v909 = vadd.s32 %v904, 1
    %vm910 = vcmp.gt.s32.totalorder %v909, 0
    %v911 = vsel %vm910, %v909, 0
    %v912 = vshrl.u32 %v911, 5
    %v913 = vand.u32 %v911, 31
    %v914 = vsub.s32 32, %v913
    %v915 = vshrl.u32 683565275, %v914
    %v916 = vshll.u32 683565275, %v913
    %v917 = vshrl.u32 2475754826, %v914
    %v918 = vor.u32 %v916, %v917
    %v919 = vshll.u32 2475754826, %v913
    %v920 = vshrl.u32 2131351028, %v914
    %v921 = vor.u32 %v919, %v920
    %v922 = vshll.u32 2131351028, %v913
    %v923 = vshrl.u32 2102212464, %v914
    %v924 = vor.u32 %v922, %v923
    %v925 = vshll.u32 2102212464, %v913
    %v926 = vshrl.u32 920167782, %v914
    %v927 = vor.u32 %v925, %v926
    %v928 = vshll.u32 920167782, %v913
    %v929 = vshrl.u32 1326507024, %v914
    %v930 = vor.u32 %v928, %v929
    %vm931 = vcmp.lt.s32.totalorder %v912, 1
    %vm932 = vcmp.lt.s32.totalorder %v912, 2
    %vm933 = vcmp.lt.s32.totalorder %v912, 3
    %vm934 = vcmp.lt.s32.totalorder %v912, 4
    %v935 = vsel %vm931, %v915, %v918
    %v936 = vsel %vm934, %v924, 2102212464
    %v937 = vsel %vm933, %v921, %v936
    %v938 = vsel %vm932, %v935, %v937
    %v939 = vsel %vm931, %v918, %v921
    %v940 = vsel %vm934, %v927, 920167782
    %v941 = vsel %vm933, %v924, %v940
    %v942 = vsel %vm932, %v939, %v941
    %v943 = vsel %vm931, %v921, %v924
    %v944 = vsel %vm934, %v930, 1326507024
    %v945 = vsel %vm933, %v927, %v944
    %v946 = vsel %vm932, %v943, %v945
    %v947 = vshll.u32 %v907, 8
    %v948 = vmul.u32.u64.compose %v947, %v946
    %v949 = vextract.low.u32 %v948
    %v950 = vextract.high.u32 %v948
    %v951 = vmul.u32.u64.compose %v947, %v942
    %v952 = vextract.low.u32 %v951
    %v953 = vextract.high.u32 %v951
    %v954 = vmul.u32 %v947, %v938
    %v955 = vadd.s32 %v950, %v952
    %vm956 = vc.u32 %v950, %v952
    %v957 = vadd.s32 %v953, 1
    %v958 = vsel %vm956, %v957, %v953
    %v959 = vadd.s32 %v954, %v958
    %v960 = vadd.s32 %v959, 536870912
    %v961 = vshrl.u32 %v960, 30
    %v962 = vshll.u32 %v961, 30
    %v963 = vsub.s32 %v959, %v962
    %vm964 = vcmp.lt.s32.totalorder %v963, 0
    %v965 = vsub.s32 0, %v963
    %v966 = vsel %vm964, %v965, %v963
    %v967 = vclz %v966
    %v968 = vsub.s32 %v967, 2
    %vm969 = vcmp.gt.s32.totalorder 0, %v968
    %v970 = vsel %vm969, 0, %v968
    %v971 = vsub.s32 32, %v970
    %v972 = vshll.u32 %v963, %v970
    %v973 = vshrl.u32 %v955, %v971
    %v974 = vor.u32 %v972, %v973
    %v975 = vsub.s32 4294967266, %v970
    %v976 = vadd.s32 %v975, 127
    %v977 = vshll.u32 %v976, 23
    %v978 = vor.u32 4788187, %v977
    %v979 = vand.u32 2147483647, %v978
    %v981 = vcvt.s32.f32 %v974
    %v982 = vmul.f32 %v981, %v979
    %v983 = vxor.u32 %v982, 2147483648
    %v984 = vsel %vm901, %v983, %v982
    %v985 = vsub.s32 4, %v961
    %v986 = vsel %vm901, %v985, %v961
    %v987 = vsel %vm900, %v17, %v984
    %v988 = vsel %vm900, 0, %v986
    %v989 = vcosq.f32.pop %v987
    %v990 = vsinq.f32.pop %v987
    %vm991 = vweird.f32 %v17
    %v992 = vand.u32 %v988, 3
    %vm993 = vcmp.lt.s32.totalorder %v992, 2
    %vm994 = vcmp.eq.s32.totalorder %v992, 0
    %v995 = vxor.u32 %v990, 2147483648
    %v996 = vsel %vm994, %v989, %v995
    %vm997 = vcmp.eq.s32.totalorder %v992, 2
    %v998 = vxor.u32 %v989, 2147483648
    %v999 = vsel %vm997, %v998, %v990
    %v1000 = vsel %vm993, %v996, %v999
    %v1001 = vsel %vm991, nan, %v1000
    %v1002 = vld [vmem:[%s2 + $0x98] sm:$0x8]
    %v1003 = vunpack.c.l.bf16 %v1002
    %1005 = vset.pattern.permute.xlu0 71
    %1006 = vperm.xlu0 %1005, %v1001
    %v1007 = vpop.permute.xlu0 %1006
    %v1010 = vunpack.c.l.s4 269488144
    %v1011 = vunpack.c.0.s8 %v1010
    %v1012 = vlaneseq
    %v1013 = vshrl.u32 %v1012, 7
    %v1014 = vsub.s32 %v1011, %v1013
    %v1015 = vrot.slane %v1007, %v1014
    %v1016 = vlaneseq
    %v1017 = vshrl.u32 %v1016, 7
    %v1018 = vsub.s32 7, %v1017
    %v1019 = vrot.slane %v1003, %v1018
    %v1020 = vmul.f32 %v1015, %v1019
    %v1025 = vunpack.c.l.b16 %v894
    %v1026 = vunpack.c.l.b16 %v895
    %v1027 = vunpack.c.l.b16 %v896
    %v1028 = vunpack.c.l.b16 %v897
    %v1029 = vpack.c.b16 %v1026, %v1025
    %v1030 = vpack.c.b16 %v1028, %v1027
    %v1034 = vsel %vm716, %v898, 0
    %1036 = vmatprep.subr.bf16.mxu0 0
    %1037 = vmatpush1.bf16.msra.mxu0 0
    %1038 = vmatprep.subr.bf16.mxu0 0
    %1039 = vmatpush1.bf16.msra.mxu0 0
    %1040 = vmatprep.subr.bf16.mxu0 0
    %1041 = vmatpush1.bf16.msra.mxu0 0
    %1042 = vmatprep.subr.bf16.mxu0 0
    %1043 = vmatpush1.bf16.msra.mxu0 0
    %1044 = vmatprep.subr.bf16.mxu0 0
    %1045 = vmatpush1.bf16.msra.mxu0 0
    %1046 = vmatprep.subr.bf16.mxu0 0
    %1047 = vmatpush1.bf16.msra.mxu0 0
    %1048 = vmatprep.subr.bf16.mxu0 0
    %1049 = vmatpush1.bf16.msra.mxu0 %v1030
    %1050 = vmatprep.subr.bf16.mxu0 0
    %1051 = vmatpush1.bf16.msra.mxu0 %v1029
    %1052 = vmatprep.subr.bf16.mxu0 0
    %1053 = vmatpush2.bf16.msra.mxu0 0
    %1054 = vmatprep.subr.bf16.mxu0 0
    %1055 = vmatpush2.bf16.msra.mxu0 0
    %1056 = vmatprep.subr.bf16.mxu0 0
    %1057 = vmatpush2.bf16.msra.mxu0 0
    %1058 = vmatprep.subr.bf16.mxu0 0
    %1059 = vmatpush2.bf16.msra.mxu0 0
    %1060 = vmatprep.subr.bf16.mxu0 0
    %1061 = vmatpush2.bf16.msra.mxu0 0
    %1062 = vmatprep.subr.bf16.mxu0 0
    %1063 = vmatpush2.bf16.msra.mxu0 0
    %1064 = vmatprep.subr.bf16.mxu0 0
    %1065 = vmatpush2.bf16.msra.mxu0 0
    %1066 = vmatprep.subr.bf16.mxu0 0
    %1067 = vmatpush2.bf16.msra.mxu0 0
    %1068 = vmatprep.mubr.bf16.mxu0 0
    %1069 = vmatmul.mubr.bf16.gmra.mxu0 %v1034
    %v1070 = vpop.f32.mrf.mxu0
    %v1071 = vadd.f32 %v1020, %v1070
    %v1072 = vpop.f32.mrf.mxu0
    %v1073 = vpop.f32.mrf.mxu0
    %v1074 = vpop.f32.mrf.mxu0
    %1075 = vdwg.mxu0
    %v1076 = vand.u32 2147483647, %v17
    %vm1077 = vcmp.le.f32.partialorder %v1076, 0.7853982
    %vm1078 = vcmp.lt.s32.totalorder %v17, 0
    %v1079 = vand.u32 %v17, 2139095040
    %v1080 = vshrl.u32 %v1079, 23
    %v1081 = vsub.s32 %v1080, 127
    %v1082 = vand.u32 2147483647, %v17
    %v1083 = vand.u32 %v1082, 8388607
    %v1084 = vor.u32 %v1083, 8388608
    %v1085 = vsub.s32 0, %v1084
    %v1086 = vadd.s32 %v1081, 1
    %vm1087 = vcmp.gt.s32.totalorder %v1086, 0
    %v1088 = vsel %vm1087, %v1086, 0
    %v1089 = vshrl.u32 %v1088, 5
    %v1090 = vand.u32 %v1088, 31
    %v1091 = vsub.s32 32, %v1090
    %v1092 = vshrl.u32 683565275, %v1091
    %v1093 = vshll.u32 683565275, %v1090
    %v1094 = vshrl.u32 2475754826, %v1091
    %v1095 = vor.u32 %v1093, %v1094
    %v1096 = vshll.u32 2475754826, %v1090
    %v1097 = vshrl.u32 2131351028, %v1091
    %v1098 = vor.u32 %v1096, %v1097
    %v1099 = vshll.u32 2131351028, %v1090
    %v1100 = vshrl.u32 2102212464, %v1091
    %v1101 = vor.u32 %v1099, %v1100
    %v1102 = vshll.u32 2102212464, %v1090
    %v1103 = vshrl.u32 920167782, %v1091
    %v1104 = vor.u32 %v1102, %v1103
    %v1105 = vshll.u32 920167782, %v1090
    %v1106 = vshrl.u32 1326507024, %v1091
    %v1107 = vor.u32 %v1105, %v1106
    %vm1108 = vcmp.lt.s32.totalorder %v1089, 1
    %vm1109 = vcmp.lt.s32.totalorder %v1089, 2
    %vm1110 = vcmp.lt.s32.totalorder %v1089, 3
    %vm1111 = vcmp.lt.s32.totalorder %v1089, 4
    %v1112 = vsel %vm1108, %v1092, %v1095
    %v1113 = vsel %vm1111, %v1101, 2102212464
    %v1114 = vsel %vm1110, %v1098, %v1113
    %v1115 = vsel %vm1109, %v1112, %v1114
    %v1116 = vsel %vm1108, %v1095, %v1098
    %v1117 = vsel %vm1111, %v1104, 920167782
    %v1118 = vsel %vm1110, %v1101, %v1117
    %v1119 = vsel %vm1109, %v1116, %v1118
    %v1120 = vsel %vm1108, %v1098, %v1101
    %v1121 = vsel %vm1111, %v1107, 1326507024
    %v1122 = vsel %vm1110, %v1104, %v1121
    %v1123 = vsel %vm1109, %v1120, %v1122
    %v1124 = vshll.u32 %v1084, 8
    %v1125 = vmul.u32.u64.compose %v1124, %v1123
    %v1126 = vextract.low.u32 %v1125
    %v1127 = vextract.high.u32 %v1125
    %v1128 = vmul.u32.u64.compose %v1124, %v1119
    %v1129 = vextract.low.u32 %v1128
    %v1130 = vextract.high.u32 %v1128
    %v1131 = vmul.u32 %v1124, %v1115
    %v1132 = vadd.s32 %v1127, %v1129
    %vm1133 = vc.u32 %v1127, %v1129
    %v1134 = vadd.s32 %v1130, 1
    %v1135 = vsel %vm1133, %v1134, %v1130
    %v1136 = vadd.s32 %v1131, %v1135
    %v1137 = vadd.s32 %v1136, 536870912
    %v1138 = vshrl.u32 %v1137, 30
    %v1139 = vshll.u32 %v1138, 30
    %v1140 = vsub.s32 %v1136, %v1139
    %vm1141 = vcmp.lt.s32.totalorder %v1140, 0
    %v1142 = vsub.s32 0, %v1140
    %v1143 = vsel %vm1141, %v1142, %v1140
    %v1144 = vclz %v1143
    %v1145 = vsub.s32 %v1144, 2
    %vm1146 = vcmp.gt.s32.totalorder 0, %v1145
    %v1147 = vsel %vm1146, 0, %v1145
    %v1148 = vsub.s32 32, %v1147
    %v1149 = vshll.u32 %v1140, %v1147
    %v1150 = vshrl.u32 %v1132, %v1148
    %v1151 = vor.u32 %v1149, %v1150
    %v1152 = vsub.s32 4294967266, %v1147
    %v1153 = vadd.s32 %v1152, 127
    %v1154 = vshll.u32 %v1153, 23
    %v1155 = vor.u32 4788187, %v1154
    %v1156 = vand.u32 2147483647, %v1155
    %v1158 = vcvt.s32.f32 %v1151
    %v1159 = vmul.f32 %v1158, %v1156
    %v1160 = vxor.u32 %v1159, 2147483648
    %v1161 = vsel %vm1078, %v1160, %v1159
    %v1162 = vsub.s32 4, %v1138
    %v1163 = vsel %vm1078, %v1162, %v1138
    %v1164 = vsel %vm1077, %v17, %v1161
    %v1165 = vsel %vm1077, 0, %v1163
    %v1166 = vcosq.f32.pop %v1164
    %v1167 = vsinq.f32.pop %v1164
    %vm1168 = vweird.f32 %v17
    %v1169 = vadd.s32 %v1165, 3
    %v1170 = vand.u32 %v1169, 3
    %vm1171 = vcmp.lt.s32.totalorder %v1170, 2
    %vm1172 = vcmp.eq.s32.totalorder %v1170, 0
    %v1173 = vxor.u32 %v1167, 2147483648
    %v1174 = vsel %vm1172, %v1166, %v1173
    %vm1175 = vcmp.eq.s32.totalorder %v1170, 2
    %v1176 = vxor.u32 %v1166, 2147483648
    %v1177 = vsel %vm1175, %v1176, %v1167
    %v1178 = vsel %vm1171, %v1174, %v1177
    %v1179 = vsel %vm1168, nan, %v1178
    %v1180 = vld [vmem:[%s2 + $0x9c] sm:$0x1]
    %v1181 = vunpack.c.l.bf16 %v1180
    %1183 = vset.pattern.permute.xlu0 71
    %1184 = vperm.xlu0 %1183, %v1179
    %v1185 = vpop.permute.xlu0 %1184
    %v1188 = vunpack.c.l.s4 269488144
    %v1189 = vunpack.c.0.s8 %v1188
    %v1190 = vlaneseq
    %v1191 = vshrl.u32 %v1190, 7
    %v1192 = vsub.s32 %v1189, %v1191
    %v1193 = vrot.slane %v1185, %v1192
    %v1194 = vlaneseq
    %v1195 = vshrl.u32 %v1194, 7
    %v1196 = vsub.s32 0, %v1195
    %v1197 = vrot.slane %v1181, %v1196
    %v1198 = vmul.f32 %v1193, %v1197
    %v1199 = vadd.f32 %v1071, %v1198
    %v1200 = vld [vmem:[%s2 + $0x98] sm:$0x4]
    %v1201 = vunpack.c.l.bf16 %v1200
    %v1202 = vlaneseq
    %v1203 = vshrl.u32 %v1202, 7
    %v1204 = vsub.s32 4, %v1203
    %v1205 = vrot.slane %v1201, %v1204
    %v1206 = vadd.f32 %v1199, %v1205
    %v1207 = vmax.f32 %v1206, 0.0
    %v1208 = vld [vmem:[%s2 + $0x78] sm:$0xf]
    %v1209 = vld [vmem:[%s2 + $0x7c] sm:$0xf]
    %v1210 = vld [vmem:[%s2 + $0x80] sm:$0xf]
    %v1211 = vld [vmem:[%s2 + $0x84] sm:$0xf]
    %v1212 = vld [vmem:[%s2 + $0x88] sm:$0xf]
    %v1213 = vld [vmem:[%s2 + $0x8c] sm:$0xf]
    %v1214 = vld [vmem:[%s2 + $0x90] sm:$0xf]
    %v1215 = vld [vmem:[%s2 + $0x94] sm:$0xf]
    %v1216 = vpack.c.bf16 %v1207, %v1207
    %v1217 = vlaneseq
    %v1218 = vshrl.u32 %v1217, 7
    %v1219 = vsub.s32 5, %v1218
    %v1220 = vrot.slane %v1201, %v1219
    %v1229 = vunpack.c.l.b16 %v1208
    %v1230 = vunpack.c.l.b16 %v1209
    %v1231 = vunpack.c.l.b16 %v1210
    %v1232 = vunpack.c.l.b16 %v1211
    %v1233 = vunpack.c.l.b16 %v1212
    %v1234 = vunpack.c.l.b16 %v1213
    %v1235 = vunpack.c.l.b16 %v1214
    %v1236 = vunpack.c.l.b16 %v1215
    %v1237 = vpack.c.b16 %v1230, %v1229
    %v1238 = vpack.c.b16 %v1232, %v1231
    %v1239 = vpack.c.b16 %v1234, %v1233
    %v1240 = vpack.c.b16 %v1236, %v1235
    %v1246 = vsel %vm757, %v1216, 0
    %1248 = vmatprep.subr.bf16.mxu0 0
    %1249 = vmatpush1.bf16.msra.mxu0 0
    %1250 = vmatprep.subr.bf16.mxu0 0
    %1251 = vmatpush1.bf16.msra.mxu0 0
    %1252 = vmatprep.subr.bf16.mxu0 0
    %1253 = vmatpush1.bf16.msra.mxu0 0
    %1254 = vmatprep.subr.bf16.mxu0 0
    %1255 = vmatpush1.bf16.msra.mxu0 0
    %1256 = vmatprep.subr.bf16.mxu0 0
    %1257 = vmatpush1.bf16.msra.mxu0 %v1240
    %1258 = vmatprep.subr.bf16.mxu0 0
    %1259 = vmatpush1.bf16.msra.mxu0 %v1239
    %1260 = vmatprep.subr.bf16.mxu0 0
    %1261 = vmatpush1.bf16.msra.mxu0 %v1238
    %1262 = vmatprep.subr.bf16.mxu0 0
    %1263 = vmatpush1.bf16.msra.mxu0 %v1237
    %1264 = vmatprep.subr.bf16.mxu0 0
    %1265 = vmatpush2.bf16.msra.mxu0 0
    %1266 = vmatprep.subr.bf16.mxu0 0
    %1267 = vmatpush2.bf16.msra.mxu0 0
    %1268 = vmatprep.subr.bf16.mxu0 0
    %1269 = vmatpush2.bf16.msra.mxu0 0
    %1270 = vmatprep.subr.bf16.mxu0 0
    %1271 = vmatpush2.bf16.msra.mxu0 0
    %1272 = vmatprep.subr.bf16.mxu0 0
    %1273 = vmatpush2.bf16.msra.mxu0 0
    %1274 = vmatprep.subr.bf16.mxu0 0
    %1275 = vmatpush2.bf16.msra.mxu0 0
    %1276 = vmatprep.subr.bf16.mxu0 0
    %1277 = vmatpush2.bf16.msra.mxu0 0
    %1278 = vmatprep.subr.bf16.mxu0 0
    %1279 = vmatpush2.bf16.msra.mxu0 0
    %1280 = vmatprep.mubr.bf16.mxu0 0
    %1281 = vmatmul.mubr.bf16.gmra.mxu0 %v1246
    %v1282 = vpop.f32.mrf.mxu0
    %v1283 = vadd.f32 %v1220, %v1282
    %v1284 = vpop.f32.mrf.mxu0
    %v1285 = vpop.f32.mrf.mxu0
    %v1286 = vpop.f32.mrf.mxu0
    %1287 = vdwg.mxu0
    %v1288 = vtanh.pop %v1283
    %1290 = vrot.lane.b32.xlu0 %v710, 6
    %v1291 = vpop.permute.xlu0 %1290
    %1293 = vrot.lane.b32.xlu0 %v801, 38
    %v1294 = vpop.permute.xlu0 %1293
    %vm1296 = vcmask 48128
    %v1297 = vsel %vm1296, %v1288, %v1291
    %vm1298 = vcmask 310272
    %v1299 = vsel %vm1298, %v1297, %v1294
    %vm1300 = vcmask 441344
    %v1301 = vsel %vm1300, %v1299, 0.0
    %1302 = vst [vmem:[#allocation2] sm:$0x3] %v1301
    // Predicated region
    $region14: #{tpu_custom_call.1} parent=1 // pred_check
      _
    $region15: #{tpu_custom_call.1} parent=1 // pred_check_branch
      %1304 = sbr.rel (0) target = $region17
    $region16: #{tpu_custom_call.1} parent=1 // pred_region
      %s1306 = ssub.s32 32, 32
      %1307 = vsyncadd [#allocation3], %s1306
      %s1309 = sshll.u32 [#allocation2], 4
      %s1310 = int_to_ptr.vmem [resolvable:$true] %s1309
      %1312 = dma.vmem_to_hbm [thread:$0]  %s1310, 32, %s3, [#allocation3]
    $region17: #{tpu_custom_call.1} parent=1 // pred_fallthru
      _
    // Predicated region
    $region18: #{tpu_custom_call.1} parent=1 // pred_check
      _
    $region19: #{tpu_custom_call.1} parent=1 // pred_check_branch
      %1314 = sbr.rel (0) target = $region21
    $region20: #{tpu_custom_call.1} parent=1 // pred_region
      %1315 = dma.done [#allocation3], 32
    $region21: #{tpu_custom_call.1} parent=1 // pred_fallthru
      _
    %1316 = vsyncpa [#allocation3], 1

</llo_original>
